<compile_context>
chip_gen: v7x
topology: tpu7x:2x2x1
jax: 0.10.0
libtpu: 0.0.40
codegen_flags: <defaults>
</compile_context>

<pallas_src>
import functools

import jax
import jax.numpy as jnp
from jax.experimental import pallas as pl
from jax.experimental.pallas import tpu as pltpu

LANE = 128          # lane width (last dim) where lane density matters
SUBLANE_BF16 = 16   # bf16 sublane packing multiple


def _round_up(x, m):
    return ((x + m - 1) // m) * m


def _pad_to(a, shape):
    pads = [(0, t - s) for s, t in zip(a.shape, shape)]
    return jnp.pad(a, pads)


# ---------------------------------------------------------------------------
# Pallas kernel: entire forward pass fused.  All operands are full VMEM blocks.
# Static sizes (f_p, h_p, o_p) are bound via functools.partial.
# ---------------------------------------------------------------------------
def stellar_gnn_kernel(adj_ref, x_ref, w_ref, b_ref, pool_ref, out_ref,
                       *, f_p, h_p, o_p):
    f32, bf16 = jnp.float32, jnp.bfloat16

    # Static views into the packed weight slab / bias buffer (aligned, free).
    w1 = w_ref[0:f_p, 0:h_p]                        # [F, H]
    w2 = w_ref[f_p:f_p + h_p, 0:h_p]                # [H, H]
    wfc = w_ref[f_p + h_p:f_p + 2 * h_p, 0:o_p]     # [H, O]
    b1 = b_ref[:, 0:h_p]
    b2 = b_ref[:, h_p:2 * h_p]
    bfc = b_ref[:, 2 * h_p:2 * h_p + o_p]

    # GCNConv 1: relu( A_hat @ (X @ W1) + b1 )   (feature transform first: F is tiny)
    xw = jnp.dot(x_ref[...], w1, preferred_element_type=f32)                      # [N, H]
    h = jnp.dot(adj_ref[...], xw.astype(bf16), preferred_element_type=f32) + b1
    h = jnp.maximum(h, 0.0)
    # NOTE: padded node rows of h are relu(b1) != 0; harmless ONLY because both the
    # adjacency's and the pool matrix's padded *columns* are zero.  Do not switch to
    # max-pool / nonzero bias padding or reuse h outside this kernel without masking.

    # GCNConv 2: relu( A_hat @ (H @ W2) + b2 )
    hw = jnp.dot(h.astype(bf16), w2, preferred_element_type=f32)                  # [N, H]
    h = jnp.dot(adj_ref[...], hw.astype(bf16), preferred_element_type=f32) + b2
    h = jnp.maximum(h, 0.0)

    # global mean pool: P @ H  with P[g, i] = (batch[i]==g) / count_g, then fc.
    pooled = jnp.dot(pool_ref[...], h.astype(bf16), preferred_element_type=f32)   # [G, H]
    out_ref[...] = (jnp.dot(pooled.astype(bf16), wfc, preferred_element_type=f32)
                    + bfc)                                                         # [G, O]


# ---------------------------------------------------------------------------
# Wrapper: pad + pack everything into TPU-friendly layouts, call the kernel,
# slice the real [num_graphs, out_dim] result back out.
# ---------------------------------------------------------------------------
def stellar_gnn_forward(adj, x, w1, b1, w2, b2, pool, wfc, bfc):
    n, f_in = x.shape
    hidden = w1.shape[1]
    num_graphs = pool.shape[0]
    out_dim = wfc.shape[1]

    # Grid-less call (blocks == full arrays): pad sublane-ish dims (N, F_in, G) only
    # to the bf16 packing multiple; keep 128-lane padding for hidden / output lanes.
    n_p = _round_up(n, SUBLANE_BF16)
    f_p = _round_up(f_in, SUBLANE_BF16)
    g_p = _round_up(num_graphs, SUBLANE_BF16)
    h_p = _round_up(hidden, LANE)
    o_p = _round_up(out_dim, LANE)
    w_cols = max(h_p, o_p)

    bf16, f32 = jnp.bfloat16, jnp.float32

    adj_p = _pad_to(adj, (n_p, n_p)).astype(bf16)      # values in [0,1] -> bf16 is safe
    x_p = _pad_to(x, (n_p, f_p)).astype(bf16)
    pool_p = _pad_to(pool, (g_p, n_p)).astype(bf16)

    # Packed weight slab: rows [0,f_p)=W1, [f_p,f_p+h_p)=W2, [f_p+h_p,f_p+2h_p)=Wfc.
    w_slab = jnp.zeros((f_p + 2 * h_p, w_cols), f32)
    w_slab = w_slab.at[0:f_in, 0:hidden].set(w1)
    w_slab = w_slab.at[f_p:f_p + hidden, 0:hidden].set(w2)
    w_slab = w_slab.at[f_p + h_p:f_p + h_p + hidden, 0:out_dim].set(wfc)
    w_slab = w_slab.astype(bf16)

    # Packed f32 bias buffer: lanes [0,h_p)=b1, [h_p,2h_p)=b2, [2h_p,2h_p+o_p)=bfc.
    b_cat = jnp.zeros((1, 2 * h_p + o_p), f32)
    b_cat = b_cat.at[:, 0:hidden].set(b1.reshape(1, -1))
    b_cat = b_cat.at[:, h_p:h_p + hidden].set(b2.reshape(1, -1))
    b_cat = b_cat.at[:, 2 * h_p:2 * h_p + out_dim].set(bfc.reshape(1, -1))

    # Actual byte footprint (for the scoped-VMEM limit and the cost estimate).
    in_bytes = (2 * (adj_p.size + x_p.size + pool_p.size + w_slab.size)
                + 4 * b_cat.size)
    out_bytes = 4 * g_p * o_p
    vmem_limit = int(max(2 * 1024 * 1024, 8 * (in_bytes + out_bytes)))

    flops = 2 * (n_p * f_p * h_p            # X @ W1
                 + n_p * n_p * h_p          # A @ (XW1)
                 + n_p * h_p * h_p          # H @ W2
                 + n_p * n_p * h_p          # A @ (HW2)
                 + g_p * n_p * h_p          # P @ H
                 + g_p * h_p * o_p)         # pooled @ Wfc

    kernel = functools.partial(stellar_gnn_kernel, f_p=f_p, h_p=h_p, o_p=o_p)
    vmem = pl.BlockSpec(memory_space=pltpu.MemorySpace.VMEM)

    out = pl.pallas_call(
        kernel,
        out_shape=jax.ShapeDtypeStruct((g_p, o_p), jnp.float32),
        in_specs=[vmem] * 5,
        out_specs=vmem,
        compiler_params=pltpu.CompilerParams(vmem_limit_bytes=vmem_limit),
        cost_estimate=pl.CostEstimate(flops=flops, transcendentals=0,
                                      bytes_accessed=in_bytes + out_bytes),
    )(adj_p, x_p, w_slab, b_cat, pool_p)

    return out[:num_graphs, :out_dim]


# ---------------------------------------------------------------------------
# Plain-JAX glue: dense normalized adjacency and mean-pool matrix
# (matches torch_geometric GCNConv gcn_norm with self-loops and global_mean_pool).
# NOTE: +I is added unconditionally; graphs with pre-existing self-loops would
# double-count them vs PyG's add_remaining_self_loops (model-fidelity note).
# ---------------------------------------------------------------------------
def build_normalized_adjacency(edge_index, num_nodes):
    src, dst = edge_index[0], edge_index[1]
    a = jnp.zeros((num_nodes, num_nodes), jnp.float32).at[dst, src].add(1.0)
    a = a + jnp.eye(num_nodes, dtype=jnp.float32)
    deg = a.sum(axis=1)
    dinv = jnp.where(deg > 0, 1.0 / jnp.sqrt(deg), 0.0)
    return a * dinv[:, None] * dinv[None, :]              # D^-1/2 (A+I) D^-1/2


def build_mean_pool_matrix(batch, num_graphs):
    onehot = (batch[None, :] == jnp.arange(num_graphs)[:, None]).astype(jnp.float32)
    counts = jnp.maximum(onehot.sum(axis=1, keepdims=True), 1.0)
    return onehot / counts                                # [G, N]


# ---------------------------------------------------------------------------
# References: full-f32 math, and a mixed-precision one matching the kernel's
# bf16-on-MXU / f32-accumulate policy exactly.
# ---------------------------------------------------------------------------
def reference_forward_f32(adj, x, w1, b1, w2, b2, pool, wfc, bfc):
    h = jnp.maximum(adj @ (x @ w1) + b1, 0.0)
    h = jnp.maximum(adj @ (h @ w2) + b2, 0.0)
    return (pool @ h) @ wfc + bfc


def reference_forward_mixed(adj, x, w1, b1, w2, b2, pool, wfc, bfc):
    bf16, f32 = jnp.bfloat16, jnp.float32
    adj = adj.astype(bf16)
    dot = lambda a, b: jnp.dot(a.astype(bf16), b.astype(bf16), preferred_element_type=f32)
    h = jnp.maximum(dot(adj, dot(x, w1)) + b1, 0.0)
    h = jnp.maximum(dot(adj, dot(h, w2)) + b2, 0.0)
    return dot(dot(pool, h), wfc) + bfc


if __name__ == "__main__":
    # Small shapes consistent with the module defaults: input_dim=3, hidden_dim=64,
    # output_dim=5, 16 nodes split across 2 graphs.
    input_dim, hidden_dim, output_dim = 3, 64, 5
    nodes_per_graph, num_graphs = 8, 2
    num_nodes = nodes_per_graph * num_graphs

    key = jax.random.PRNGKey(0)
    kx, k1, k2, k3, kb1, kb2, kb3 = jax.random.split(key, 7)

    # node features
    x = jax.random.normal(kx, (num_nodes, input_dim), dtype=jnp.float32)

    # undirected chain edges within each graph (deterministic)
    src_list, dst_list = [], []
    for g in range(num_graphs):
        off = g * nodes_per_graph
        for i in range(nodes_per_graph - 1):
            src_list += [off + i, off + i + 1]
            dst_list += [off + i + 1, off + i]
    edge_index = jnp.array([src_list, dst_list], dtype=jnp.int32)   # [2, E]

    # graph assignment per node
    batch = jnp.repeat(jnp.arange(num_graphs, dtype=jnp.int32), nodes_per_graph)

    # deterministic parameter init (GCNConv weight as [in, out]; bias as [1, out])
    w1 = jax.random.normal(k1, (input_dim, hidden_dim), dtype=jnp.float32) * 0.1
    b1 = jax.random.normal(kb1, (1, hidden_dim), dtype=jnp.float32) * 0.1
    w2 = jax.random.normal(k2, (hidden_dim, hidden_dim), dtype=jnp.float32) * 0.1
    b2 = jax.random.normal(kb2, (1, hidden_dim), dtype=jnp.float32) * 0.1
    wfc = jax.random.normal(k3, (hidden_dim, output_dim), dtype=jnp.float32) * 0.1
    bfc = jax.random.normal(kb3, (1, output_dim), dtype=jnp.float32) * 0.1

    adj = build_normalized_adjacency(edge_index, num_nodes)          # [N, N]
    pool = build_mean_pool_matrix(batch, num_graphs)                 # [G, N]

    out = stellar_gnn_forward(adj, x, w1, b1, w2, b2, pool, wfc, bfc)
    out = jax.block_until_ready(out)

    ref_mixed = reference_forward_mixed(adj, x, w1, b1, w2, b2, pool, wfc, bfc)
    ref_f32 = reference_forward_f32(adj, x, w1, b1, w2, b2, pool, wfc, bfc)

    assert out.shape == (num_graphs, output_dim)
    # Exact-policy check (same bf16/f32-accumulate math as the kernel):
    assert jnp.allclose(out, ref_mixed, atol=1e-3, rtol=1e-3), \
        "kernel mismatch vs mixed-precision reference"
    # Sanity check vs full-f32 math (bf16 MXU inputs -> looser tolerance):
    assert jnp.allclose(out, ref_f32, atol=3e-2, rtol=3e-2), \
        "kernel mismatch vs f32 reference"

    print("KERNEL_OK")
</pallas_src>

<mosaic_0001>
module attributes {stable_mosaic.version = 11 : i64} {
  func.func @stellar_gnn_kernel(%arg0: memref<16x16xbf16, #tpu.memory_space<vmem>>, %arg1: memref<16x16xbf16, #tpu.memory_space<vmem>>, %arg2: memref<272x128xbf16, #tpu.memory_space<vmem>>, %arg3: memref<1x384xf32, #tpu.memory_space<vmem>>, %arg4: memref<16x16xbf16, #tpu.memory_space<vmem>>, %arg5: memref<16x128xf32, #tpu.memory_space<vmem>>) attributes {dimension_semantics = [], scalar_prefetch = 0 : i64, scratch_operands = 0 : i64, tpu.core_type = #tpu.core_type<tc>} {
    %c0 = arith.constant 0 : index
    %c0_0 = arith.constant 0 : index
    %0 = vector.load %arg2[%c0, %c0_0] : memref<272x128xbf16, #tpu.memory_space<vmem>>, vector<16x128xbf16>
    %c16 = arith.constant 16 : index
    %c0_1 = arith.constant 0 : index
    %1 = vector.load %arg2[%c16, %c0_1] : memref<272x128xbf16, #tpu.memory_space<vmem>>, vector<128x128xbf16>
    %c144 = arith.constant 144 : index
    %c0_2 = arith.constant 0 : index
    %2 = vector.load %arg2[%c144, %c0_2] : memref<272x128xbf16, #tpu.memory_space<vmem>>, vector<128x128xbf16>
    %c0_3 = arith.constant 0 : index
    %c0_4 = arith.constant 0 : index
    %3 = vector.load %arg3[%c0_3, %c0_4] : memref<1x384xf32, #tpu.memory_space<vmem>>, vector<1x128xf32>
    %c0_5 = arith.constant 0 : index
    %c128 = arith.constant 128 : index
    %4 = vector.load %arg3[%c0_5, %c128] : memref<1x384xf32, #tpu.memory_space<vmem>>, vector<1x128xf32>
    %c0_6 = arith.constant 0 : index
    %c256 = arith.constant 256 : index
    %5 = vector.load %arg3[%c0_6, %c256] : memref<1x384xf32, #tpu.memory_space<vmem>>, vector<1x128xf32>
    %c0_7 = arith.constant 0 : index
    %c0_8 = arith.constant 0 : index
    %6 = vector.load %arg1[%c0_7, %c0_8] : memref<16x16xbf16, #tpu.memory_space<vmem>>, vector<16x16xbf16>
    %cst = arith.constant dense<0.000000e+00> : vector<16x128xf32>
    %7 = tpu.matmul %6, %0, %cst {dimension_numbers = #tpu.dot_dimension_numbers<[1], [0], [0], [1], [0, 0, 1, 1], [], []>} : vector<16x16xbf16>, vector<16x128xbf16>, vector<16x128xf32> -> vector<16x128xf32>
    %c0_9 = arith.constant 0 : index
    %c0_10 = arith.constant 0 : index
    %8 = vector.load %arg0[%c0_9, %c0_10] : memref<16x16xbf16, #tpu.memory_space<vmem>>, vector<16x16xbf16>
    %9 = arith.truncf %7 : vector<16x128xf32> to vector<16x128xbf16>
    %cst_11 = arith.constant dense<0.000000e+00> : vector<16x128xf32>
    %10 = tpu.matmul %8, %9, %cst_11 {dimension_numbers = #tpu.dot_dimension_numbers<[1], [0], [0], [1], [0, 0, 1, 1], [], []>} : vector<16x16xbf16>, vector<16x128xbf16>, vector<16x128xf32> -> vector<16x128xf32>
    %11 = vector.broadcast %3 : vector<1x128xf32> to vector<16x128xf32>
    %12 = arith.addf %10, %11 : vector<16x128xf32>
    %cst_12 = arith.constant 0.000000e+00 : f32
    %13 = vector.broadcast %cst_12 : f32 to vector<16x128xf32>
    %14 = arith.maximumf %12, %13 : vector<16x128xf32>
    %15 = arith.truncf %14 : vector<16x128xf32> to vector<16x128xbf16>
    %cst_13 = arith.constant dense<0.000000e+00> : vector<16x128xf32>
    %16 = tpu.matmul %15, %1, %cst_13 {dimension_numbers = #tpu.dot_dimension_numbers<[1], [0], [0], [1], [0, 0, 1, 1], [], []>} : vector<16x128xbf16>, vector<128x128xbf16>, vector<16x128xf32> -> vector<16x128xf32>
    %c0_14 = arith.constant 0 : index
    %c0_15 = arith.constant 0 : index
    %17 = vector.load %arg0[%c0_14, %c0_15] : memref<16x16xbf16, #tpu.memory_space<vmem>>, vector<16x16xbf16>
    %18 = arith.truncf %16 : vector<16x128xf32> to vector<16x128xbf16>
    %cst_16 = arith.constant dense<0.000000e+00> : vector<16x128xf32>
    %19 = tpu.matmul %17, %18, %cst_16 {dimension_numbers = #tpu.dot_dimension_numbers<[1], [0], [0], [1], [0, 0, 1, 1], [], []>} : vector<16x16xbf16>, vector<16x128xbf16>, vector<16x128xf32> -> vector<16x128xf32>
    %20 = vector.broadcast %4 : vector<1x128xf32> to vector<16x128xf32>
    %21 = arith.addf %19, %20 : vector<16x128xf32>
    %cst_17 = arith.constant 0.000000e+00 : f32
    %22 = vector.broadcast %cst_17 : f32 to vector<16x128xf32>
    %23 = arith.maximumf %21, %22 : vector<16x128xf32>
    %c0_18 = arith.constant 0 : index
    %c0_19 = arith.constant 0 : index
    %24 = vector.load %arg4[%c0_18, %c0_19] : memref<16x16xbf16, #tpu.memory_space<vmem>>, vector<16x16xbf16>
    %25 = arith.truncf %23 : vector<16x128xf32> to vector<16x128xbf16>
    %cst_20 = arith.constant dense<0.000000e+00> : vector<16x128xf32>
    %26 = tpu.matmul %24, %25, %cst_20 {dimension_numbers = #tpu.dot_dimension_numbers<[1], [0], [0], [1], [0, 0, 1, 1], [], []>} : vector<16x16xbf16>, vector<16x128xbf16>, vector<16x128xf32> -> vector<16x128xf32>
    %27 = arith.truncf %26 : vector<16x128xf32> to vector<16x128xbf16>
    %cst_21 = arith.constant dense<0.000000e+00> : vector<16x128xf32>
    %28 = tpu.matmul %27, %2, %cst_21 {dimension_numbers = #tpu.dot_dimension_numbers<[1], [0], [0], [1], [0, 0, 1, 1], [], []>} : vector<16x128xbf16>, vector<128x128xbf16>, vector<16x128xf32> -> vector<16x128xf32>
    %29 = vector.broadcast %5 : vector<1x128xf32> to vector<16x128xf32>
    %30 = arith.addf %28, %29 : vector<16x128xf32>
    %c0_22 = arith.constant 0 : index
    %c0_23 = arith.constant 0 : index
    %31 = vector.load %arg5[%c0_22, %c0_23] : memref<16x128xf32, #tpu.memory_space<vmem>>, vector<16x128xf32>
    tpu.vector_store %arg5[%c0_22, %c0_23], %30 {strides = array<i32>} : memref<16x128xf32, #tpu.memory_space<vmem>>, vector<16x128xf32>,
    return
  }
}

</mosaic_0001>

<llo_original>
// kernel: tpu_custom_call.1
$region0: #{tpu_custom_call.1}
  #allocation0 [shape = 'u32[]', space=smem, size = 0x4, offset = 0x4, fixed_abs, tag = 'smem constant byte address 0x4 - core index']
  #allocation1 [shape = 'u32[144,128]{1,0:T(1,128)}', space=vmem, size = 0x12000, scoped, tag = 'internal scratch']
  %s0 = inlined_call_operand.hbm [shape: bf16[16,16], index: 0, kind: input, shape index: {}]
  %s1 = inlined_call_operand.hbm [shape: bf16[16,16], index: 1, kind: input, shape index: {}]
  %s2 = inlined_call_operand.hbm [shape: bf16[272,128], index: 2, kind: input, shape index: {}]
  %s3 = inlined_call_operand.vmem [shape: f32[1,384], index: 3, kind: input, shape index: {}]
  %s4 = inlined_call_operand.vmem [shape: bf16[16,16], index: 4, kind: input, shape index: {}]
  %s5 = inlined_call_operand.hbm [shape: f32[16,128], index: 5, kind: output, shape index: {}]
  %s6 = sld [smem:[#allocation0]]
  $region42: #{tpu_custom_call.1} parent=0
    _
  %s8 = ssub.s32 1, %s6
  %s9 = scalar_select 0, %s8, %s6
  $region1: #{tpu_custom_call.1} parent=0
    #allocation2 [shape = 'u8[4096]{0}', space=vmem, size = 0x1000, scoped, tag = 'input window, operand 0, single buffered']
    #allocation3 [shape = 's32[1]{0}', space=sflag, size = 0x4, scoped, tag = 'scoped memory for tpu_custom_call.1']
    #allocation4 [shape = 's32[1]{0}', space=sflag, size = 0x4, scoped, tag = 'scoped memory for tpu_custom_call.1']
    #allocation5 [shape = 'u8[4096]{0}', space=vmem, size = 0x1000, scoped, tag = 'input window, operand 1, single buffered']
    #allocation6 [shape = 's32[1]{0}', space=sflag, size = 0x4, scoped, tag = 'scoped memory for tpu_custom_call.1']
    #allocation7 [shape = 'u8[69632]{0}', space=vmem, size = 0x11000, scoped, tag = 'input window, operand 2, single buffered']
    #allocation8 [shape = 'u8[8192]{0}', space=vmem, size = 0x2000, scoped, tag = 'output window, operand 0, single buffered']
    %10 = vsyncpa [#allocation3], 0
    %11 = vsyncpa [#allocation6], 0
    %12 = vsyncpa [#allocation4], 0
    // Predicated region
    $region2: #{tpu_custom_call.1} parent=1 // pred_check
      _
    $region3: #{tpu_custom_call.1} parent=1 // pred_check_branch
      %14 = sbr.rel (0) target = $region5
    $region4: #{tpu_custom_call.1} parent=1 // pred_region
      %s16 = ssub.s32 128, 128
      %17 = vsyncadd [#allocation3], %s16
      %s18 = sshll.u32 [#allocation2], 4
      %s19 = int_to_ptr.vmem [resolvable:$true] %s18
      %24 = dma.hbm_to_vmem [thread:$0]  %s0, 128, %s19, [#allocation3], 64, 64, 4
    $region5: #{tpu_custom_call.1} parent=1 // pred_fallthru
      _
    // Predicated region
    $region6: #{tpu_custom_call.1} parent=1 // pred_check
      _
    $region7: #{tpu_custom_call.1} parent=1 // pred_check_branch
      %26 = sbr.rel (0) target = $region9
    $region8: #{tpu_custom_call.1} parent=1 // pred_region
      %s28 = ssub.s32 128, 128
      %29 = vsyncadd [#allocation6], %s28
      %s30 = sshll.u32 [#allocation5], 4
      %s31 = int_to_ptr.vmem [resolvable:$true] %s30
      %36 = dma.hbm_to_vmem [thread:$0]  %s1, 128, %s31, [#allocation6], 64, 64, 4
    $region9: #{tpu_custom_call.1} parent=1 // pred_fallthru
      _
    // Predicated region
    $region10: #{tpu_custom_call.1} parent=1 // pred_check
      _
    $region11: #{tpu_custom_call.1} parent=1 // pred_check_branch
      %38 = sbr.rel (0) target = $region13
    $region12: #{tpu_custom_call.1} parent=1 // pred_region
      %s40 = ssub.s32 2176, 2176
      %41 = vsyncadd [#allocation6], %s40
      %s42 = sshll.u32 [#allocation7], 4
      %s43 = int_to_ptr.vmem [resolvable:$true] %s42
      %48 = dma.hbm_to_vmem [thread:$0]  %s2, 2176, %s43, [#allocation6], 64, 64, 4
    $region13: #{tpu_custom_call.1} parent=1 // pred_fallthru
      _
    // Predicated region
    $region14: #{tpu_custom_call.1} parent=1 // pred_check
      _
    $region15: #{tpu_custom_call.1} parent=1 // pred_check_branch
      %50 = sbr.rel (0) target = $region17
    $region16: #{tpu_custom_call.1} parent=1 // pred_region
      _
    $region17: #{tpu_custom_call.1} parent=1 // pred_fallthru
      _
    // Predicated region
    $region18: #{tpu_custom_call.1} parent=1 // pred_check
      _
    $region19: #{tpu_custom_call.1} parent=1 // pred_check_branch
      %52 = sbr.rel (0) target = $region21
    $region20: #{tpu_custom_call.1} parent=1 // pred_region
      _
    $region21: #{tpu_custom_call.1} parent=1 // pred_fallthru
      _
    // Predicated region
    $region22: #{tpu_custom_call.1} parent=1 // pred_check
      _
    $region23: #{tpu_custom_call.1} parent=1 // pred_check_branch
      %54 = sbr.rel (0) target = $region25
    $region24: #{tpu_custom_call.1} parent=1 // pred_region
      %55 = dma.done [#allocation3], 128
    $region25: #{tpu_custom_call.1} parent=1 // pred_fallthru
      _
    // Predicated region
    $region26: #{tpu_custom_call.1} parent=1 // pred_check
      _
    $region27: #{tpu_custom_call.1} parent=1 // pred_check_branch
      %57 = sbr.rel (0) target = $region29
    $region28: #{tpu_custom_call.1} parent=1 // pred_region
      %58 = dma.done [#allocation6], 128
    $region29: #{tpu_custom_call.1} parent=1 // pred_fallthru
      _
    // Predicated region
    $region30: #{tpu_custom_call.1} parent=1 // pred_check
      _
    $region31: #{tpu_custom_call.1} parent=1 // pred_check_branch
      %60 = sbr.rel (0) target = $region33
    $region32: #{tpu_custom_call.1} parent=1 // pred_region
      %61 = dma.done [#allocation6], 2176
    $region33: #{tpu_custom_call.1} parent=1 // pred_fallthru
      _
    %v63 = vld [vmem:[#allocation7] sm:$0xf]
    %v64 = vld [vmem:[#allocation7 + $0x4] sm:$0xf]
    %v65 = vld [vmem:[#allocation7 + $0x8] sm:$0xf]
    %v66 = vld [vmem:[#allocation7 + $0xc] sm:$0xf]
    %v67 = vld [vmem:[#allocation7 + $0x10] sm:$0xf]
    %v68 = vld [vmem:[#allocation7 + $0x14] sm:$0xf]
    %v69 = vld [vmem:[#allocation7 + $0x18] sm:$0xf]
    %v70 = vld [vmem:[#allocation7 + $0x1c] sm:$0xf]
    %v71 = vld [vmem:[#allocation7 + $0x20] sm:$0xf]
    %v72 = vld [vmem:[#allocation7 + $0x24] sm:$0xf]
    %v73 = vld [vmem:[#allocation7 + $0x28] sm:$0xf]
    %v74 = vld [vmem:[#allocation7 + $0x2c] sm:$0xf]
    %v75 = vld [vmem:[#allocation7 + $0x30] sm:$0xf]
    %v76 = vld [vmem:[#allocation7 + $0x34] sm:$0xf]
    %v77 = vld [vmem:[#allocation7 + $0x38] sm:$0xf]
    %v78 = vld [vmem:[#allocation7 + $0x3c] sm:$0xf]
    %v79 = vld [vmem:[#allocation7 + $0x40] sm:$0xf]
    %v80 = vld [vmem:[#allocation7 + $0x44] sm:$0xf]
    %v81 = vld [vmem:[#allocation7 + $0x48] sm:$0xf]
    %v82 = vld [vmem:[#allocation7 + $0x4c] sm:$0xf]
    %v83 = vld [vmem:[#allocation7 + $0x50] sm:$0xf]
    %v84 = vld [vmem:[#allocation7 + $0x54] sm:$0xf]
    %v85 = vld [vmem:[#allocation7 + $0x58] sm:$0xf]
    %v86 = vld [vmem:[#allocation7 + $0x5c] sm:$0xf]
    %v87 = vld [vmem:[#allocation7 + $0x60] sm:$0xf]
    %v88 = vld [vmem:[#allocation7 + $0x64] sm:$0xf]
    %v89 = vld [vmem:[#allocation7 + $0x68] sm:$0xf]
    %v90 = vld [vmem:[#allocation7 + $0x6c] sm:$0xf]
    %v91 = vld [vmem:[#allocation7 + $0x70] sm:$0xf]
    %v92 = vld [vmem:[#allocation7 + $0x74] sm:$0xf]
    %v93 = vld [vmem:[#allocation7 + $0x78] sm:$0xf]
    %v94 = vld [vmem:[#allocation7 + $0x7c] sm:$0xf]
    %v95 = vld [vmem:[#allocation7 + $0x80] sm:$0xf]
    %v96 = vld [vmem:[#allocation7 + $0x84] sm:$0xf]
    %v97 = vld [vmem:[%s3] sm:$0x1]
    %v98 = vld [vmem:[%s3 + $0x1] sm:$0x1]
    %v99 = vld [vmem:[%s3 + $0x2] sm:$0x1]
    %v100 = vld [vmem:[#allocation5] sm:$0xf]
    %v101 = vld [vmem:[#allocation5 + $0x4] sm:$0xf]
    %v104 = vunpack.c.l.b16 %v100
    %v105 = vunpack.c.l.b16 %v101
    %v106 = vpack.c.b16 %v105, %v104
    %v109 = vunpack.c.l.b16 %v63
    %v110 = vunpack.c.l.b16 %v64
    %v111 = vpack.c.b16 %v110, %v109
    %vm113 = vcmask 130048
    %v115 = vsel %vm113, %v106, 0
    %117 = vmatprep.subr.bf16.mxu0 0
    %118 = vmatpush1.bf16.msra.mxu0 %v111
    %119 = vmatprep.subr.bf16.mxu0 0
    %120 = vmatpush1.bf16.msra.mxu0 0
    %121 = vmatprep.subr.bf16.mxu0 0
    %122 = vmatpush1.bf16.msra.mxu0 0
    %123 = vmatprep.subr.bf16.mxu0 0
    %124 = vmatpush1.bf16.msra.mxu0 0
    %125 = vmatprep.subr.bf16.mxu0 0
    %126 = vmatpush1.bf16.msra.mxu0 0
    %127 = vmatprep.subr.bf16.mxu0 0
    %128 = vmatpush1.bf16.msra.mxu0 0
    %129 = vmatprep.subr.bf16.mxu0 0
    %130 = vmatpush1.bf16.msra.mxu0 0
    %131 = vmatprep.subr.bf16.mxu0 0
    %132 = vmatpush1.bf16.msra.mxu0 0
    %133 = vmatprep.subr.bf16.mxu0 0
    %134 = vmatpush1.bf16.msra.mxu0 0
    %135 = vmatprep.subr.bf16.mxu0 0
    %136 = vmatpush1.bf16.msra.mxu0 0
    %137 = vmatprep.subr.bf16.mxu0 0
    %138 = vmatpush1.bf16.msra.mxu0 0
    %139 = vmatprep.subr.bf16.mxu0 0
    %140 = vmatpush1.bf16.msra.mxu0 0
    %141 = vmatprep.subr.bf16.mxu0 0
    %142 = vmatpush1.bf16.msra.mxu0 0
    %143 = vmatprep.subr.bf16.mxu0 0
    %144 = vmatpush1.bf16.msra.mxu0 0
    %145 = vmatprep.subr.bf16.mxu0 0
    %146 = vmatpush1.bf16.msra.mxu0 0
    %147 = vmatprep.subr.bf16.mxu0 0
    %148 = vmatpush1.bf16.msra.mxu0 0
    %149 = vmatprep.mubr.bf16.mxu0 0
    %150 = vmatmul.mubr.bf16.gmra.mrb[0].mxu0 %v115
    %v151 = vpop.f32.mrb[0].mxu0
    %v152 = vadd.f32 0.0, %v151
    %v153 = vpop.f32.mrb[0].mxu0
    %v154 = vpop.f32.mrb[0].mxu0
    %v155 = vadd.f32 0.0, %v154
    %v156 = vpop.f32.mrb[0].mxu0
    %157 = vdwg.mxu0
    %v158 = vld [vmem:[#allocation2] sm:$0xf]
    %v159 = vld [vmem:[#allocation2 + $0x4] sm:$0xf]
    %v160 = vpack.c.bf16 %v155, %v152
    %v162 = vlaneseq
    %v163 = vshrl.u32 %v162, 7
    %v164 = vsub.s32 0, %v163
    %v165 = vrot.slane %v97, %v164
    %v169 = vunpack.c.l.b16 %v158
    %v170 = vunpack.c.l.b16 %v159
    %v171 = vpack.c.b16 %v170, %v169
    %v173 = vsel %vm113, %v171, 0
    %175 = vmatprep.subr.bf16.mxu0 0
    %176 = vmatpush1.bf16.msra.mxu0 %v160
    %177 = vmatprep.subr.bf16.mxu0 0
    %178 = vmatpush1.bf16.msra.mxu0 0
    %179 = vmatprep.subr.bf16.mxu0 0
    %180 = vmatpush1.bf16.msra.mxu0 0
    %181 = vmatprep.subr.bf16.mxu0 0
    %182 = vmatpush1.bf16.msra.mxu0 0
    %183 = vmatprep.subr.bf16.mxu0 0
    %184 = vmatpush1.bf16.msra.mxu0 0
    %185 = vmatprep.subr.bf16.mxu0 0
    %186 = vmatpush1.bf16.msra.mxu0 0
    %187 = vmatprep.subr.bf16.mxu0 0
    %188 = vmatpush1.bf16.msra.mxu0 0
    %189 = vmatprep.subr.bf16.mxu0 0
    %190 = vmatpush1.bf16.msra.mxu0 0
    %191 = vmatprep.subr.bf16.mxu0 0
    %192 = vmatpush1.bf16.msra.mxu0 0
    %193 = vmatprep.subr.bf16.mxu0 0
    %194 = vmatpush1.bf16.msra.mxu0 0
    %195 = vmatprep.subr.bf16.mxu0 0
    %196 = vmatpush1.bf16.msra.mxu0 0
    %197 = vmatprep.subr.bf16.mxu0 0
    %198 = vmatpush1.bf16.msra.mxu0 0
    %199 = vmatprep.subr.bf16.mxu0 0
    %200 = vmatpush1.bf16.msra.mxu0 0
    %201 = vmatprep.subr.bf16.mxu0 0
    %202 = vmatpush1.bf16.msra.mxu0 0
    %203 = vmatprep.subr.bf16.mxu0 0
    %204 = vmatpush1.bf16.msra.mxu0 0
    %205 = vmatprep.subr.bf16.mxu0 0
    %206 = vmatpush1.bf16.msra.mxu0 0
    %207 = vmatprep.mubr.bf16.mxu0 0
    %208 = vmatmul.mubr.bf16.gmra.mrb[0].mxu0 %v173
    %v209 = vpop.f32.mrb[0].mxu0
    %v210 = vadd.f32 %v165, %v209
    %v211 = vpop.f32.mrb[0].mxu0
    %v212 = vpop.f32.mrb[0].mxu0
    %v213 = vadd.f32 %v165, %v212
    %v214 = vpop.f32.mrb[0].mxu0
    %215 = vdwg.mxu0
    %v216 = vmax.f32 %v210, 0.0
    %v217 = vmax.f32 %v213, 0.0
    %v218 = vpack.c.bf16 %v217, %v216
    %v235 = vunpack.c.l.b16 %v65
    %v236 = vunpack.c.l.b16 %v66
    %v237 = vunpack.c.l.b16 %v67
    %v238 = vunpack.c.l.b16 %v68
    %v239 = vunpack.c.l.b16 %v69
    %v240 = vunpack.c.l.b16 %v70
    %v241 = vunpack.c.l.b16 %v71
    %v242 = vunpack.c.l.b16 %v72
    %v243 = vunpack.c.l.b16 %v73
    %v244 = vunpack.c.l.b16 %v74
    %v245 = vunpack.c.l.b16 %v75
    %v246 = vunpack.c.l.b16 %v76
    %v247 = vunpack.c.l.b16 %v77
    %v248 = vunpack.c.l.b16 %v78
    %v249 = vunpack.c.l.b16 %v79
    %v250 = vunpack.c.l.b16 %v80
    %v251 = vpack.c.b16 %v236, %v235
    %v252 = vpack.c.b16 %v238, %v237
    %v253 = vpack.c.b16 %v240, %v239
    %v254 = vpack.c.b16 %v242, %v241
    %v255 = vpack.c.b16 %v244, %v243
    %v256 = vpack.c.b16 %v246, %v245
    %v257 = vpack.c.b16 %v248, %v247
    %v258 = vpack.c.b16 %v250, %v249
    %267 = vmatprep.subr.bf16.mxu0 0
    %268 = vmatpush1.bf16.msra.mxu0 %v251
    %269 = vmatprep.subr.bf16.mxu0 0
    %270 = vmatpush1.bf16.msra.mxu0 %v252
    %271 = vmatprep.subr.bf16.mxu0 0
    %272 = vmatpush1.bf16.msra.mxu0 %v253
    %273 = vmatprep.subr.bf16.mxu0 0
    %274 = vmatpush1.bf16.msra.mxu0 %v254
    %275 = vmatprep.subr.bf16.mxu0 0
    %276 = vmatpush1.bf16.msra.mxu0 %v255
    %277 = vmatprep.subr.bf16.mxu0 0
    %278 = vmatpush1.bf16.msra.mxu0 %v256
    %279 = vmatprep.subr.bf16.mxu0 0
    %280 = vmatpush1.bf16.msra.mxu0 %v257
    %281 = vmatprep.subr.bf16.mxu0 0
    %282 = vmatpush1.bf16.msra.mxu0 %v258
    %283 = vmatprep.subr.bf16.mxu0 0
    %284 = vmatpush1.bf16.msra.mxu0 0
    %285 = vmatprep.subr.bf16.mxu0 0
    %286 = vmatpush1.bf16.msra.mxu0 0
    %287 = vmatprep.subr.bf16.mxu0 0
    %288 = vmatpush1.bf16.msra.mxu0 0
    %289 = vmatprep.subr.bf16.mxu0 0
    %290 = vmatpush1.bf16.msra.mxu0 0
    %291 = vmatprep.subr.bf16.mxu0 0
    %292 = vmatpush1.bf16.msra.mxu0 0
    %293 = vmatprep.subr.bf16.mxu0 0
    %294 = vmatpush1.bf16.msra.mxu0 0
    %295 = vmatprep.subr.bf16.mxu0 0
    %296 = vmatpush1.bf16.msra.mxu0 0
    %297 = vmatprep.subr.bf16.mxu0 0
    %298 = vmatpush1.bf16.msra.mxu0 0
    %299 = vmatprep.mubr.bf16.mxu0 0
    %300 = vmatmul.mubr.bf16.gmra.mrb[0].mxu0 %v218
    %v301 = vpop.f32.mrb[0].mxu0
    %v302 = vadd.f32 0.0, %v301
    %v303 = vpop.f32.mrb[0].mxu0
    %v304 = vpop.f32.mrb[0].mxu0
    %v305 = vadd.f32 0.0, %v304
    %v306 = vpop.f32.mrb[0].mxu0
    %307 = vdwg.mxu0
    %v308 = vpack.c.bf16 %v305, %v302
    %v310 = vlaneseq
    %v311 = vshrl.u32 %v310, 7
    %v312 = vsub.s32 0, %v311
    %v313 = vrot.slane %v98, %v312
    %315 = vmatprep.subr.bf16.mxu0 0
    %316 = vmatpush1.bf16.msra.mxu0 %v308
    %317 = vmatprep.subr.bf16.mxu0 0
    %318 = vmatpush1.bf16.msra.mxu0 0
    %319 = vmatprep.subr.bf16.mxu0 0
    %320 = vmatpush1.bf16.msra.mxu0 0
    %321 = vmatprep.subr.bf16.mxu0 0
    %322 = vmatpush1.bf16.msra.mxu0 0
    %323 = vmatprep.subr.bf16.mxu0 0
    %324 = vmatpush1.bf16.msra.mxu0 0
    %325 = vmatprep.subr.bf16.mxu0 0
    %326 = vmatpush1.bf16.msra.mxu0 0
    %327 = vmatprep.subr.bf16.mxu0 0
    %328 = vmatpush1.bf16.msra.mxu0 0
    %329 = vmatprep.subr.bf16.mxu0 0
    %330 = vmatpush1.bf16.msra.mxu0 0
    %331 = vmatprep.subr.bf16.mxu0 0
    %332 = vmatpush1.bf16.msra.mxu0 0
    %333 = vmatprep.subr.bf16.mxu0 0
    %334 = vmatpush1.bf16.msra.mxu0 0
    %335 = vmatprep.subr.bf16.mxu0 0
    %336 = vmatpush1.bf16.msra.mxu0 0
    %337 = vmatprep.subr.bf16.mxu0 0
    %338 = vmatpush1.bf16.msra.mxu0 0
    %339 = vmatprep.subr.bf16.mxu0 0
    %340 = vmatpush1.bf16.msra.mxu0 0
    %341 = vmatprep.subr.bf16.mxu0 0
    %342 = vmatpush1.bf16.msra.mxu0 0
    %343 = vmatprep.subr.bf16.mxu0 0
    %344 = vmatpush1.bf16.msra.mxu0 0
    %345 = vmatprep.subr.bf16.mxu0 0
    %346 = vmatpush1.bf16.msra.mxu0 0
    %347 = vmatprep.mubr.bf16.mxu0 0
    %348 = vmatmul.mubr.bf16.gmra.mrb[0].mxu0 %v173
    %v349 = vpop.f32.mrb[0].mxu0
    %v350 = vadd.f32 %v313, %v349
    %v351 = vpop.f32.mrb[0].mxu0
    %v352 = vpop.f32.mrb[0].mxu0
    %v353 = vadd.f32 %v313, %v352
    %v354 = vpop.f32.mrb[0].mxu0
    %355 = vdwg.mxu0
    %v356 = vmax.f32 %v350, 0.0
    %v357 = vmax.f32 %v353, 0.0
    %v358 = vld [vmem:[%s4] sm:$0xf]
    %v359 = vld [vmem:[%s4 + $0x4] sm:$0xf]
    %v360 = vpack.c.bf16 %v357, %v356
    %v363 = vunpack.c.l.b16 %v358
    %v364 = vunpack.c.l.b16 %v359
    %v365 = vpack.c.b16 %v364, %v363
    %v367 = vsel %vm113, %v365, 0
    %369 = vmatprep.subr.bf16.mxu0 0
    %370 = vmatpush1.bf16.msra.mxu0 %v360
    %371 = vmatprep.subr.bf16.mxu0 0
    %372 = vmatpush1.bf16.msra.mxu0 0
    %373 = vmatprep.subr.bf16.mxu0 0
    %374 = vmatpush1.bf16.msra.mxu0 0
    %375 = vmatprep.subr.bf16.mxu0 0
    %376 = vmatpush1.bf16.msra.mxu0 0
    %377 = vmatprep.subr.bf16.mxu0 0
    %378 = vmatpush1.bf16.msra.mxu0 0
    %379 = vmatprep.subr.bf16.mxu0 0
    %380 = vmatpush1.bf16.msra.mxu0 0
    %381 = vmatprep.subr.bf16.mxu0 0
    %382 = vmatpush1.bf16.msra.mxu0 0
    %383 = vmatprep.subr.bf16.mxu0 0
    %384 = vmatpush1.bf16.msra.mxu0 0
    %385 = vmatprep.subr.bf16.mxu0 0
    %386 = vmatpush1.bf16.msra.mxu0 0
    %387 = vmatprep.subr.bf16.mxu0 0
    %388 = vmatpush1.bf16.msra.mxu0 0
    %389 = vmatprep.subr.bf16.mxu0 0
    %390 = vmatpush1.bf16.msra.mxu0 0
    %391 = vmatprep.subr.bf16.mxu0 0
    %392 = vmatpush1.bf16.msra.mxu0 0
    %393 = vmatprep.subr.bf16.mxu0 0
    %394 = vmatpush1.bf16.msra.mxu0 0
    %395 = vmatprep.subr.bf16.mxu0 0
    %396 = vmatpush1.bf16.msra.mxu0 0
    %397 = vmatprep.subr.bf16.mxu0 0
    %398 = vmatpush1.bf16.msra.mxu0 0
    %399 = vmatprep.subr.bf16.mxu0 0
    %400 = vmatpush1.bf16.msra.mxu0 0
    %401 = vmatprep.mubr.bf16.mxu0 0
    %402 = vmatmul.mubr.bf16.gmra.mrb[0].mxu0 %v367
    %v403 = vpop.f32.mrb[0].mxu0
    %v404 = vadd.f32 0.0, %v403
    %v405 = vpop.f32.mrb[0].mxu0
    %v406 = vpop.f32.mrb[0].mxu0
    %v407 = vadd.f32 0.0, %v406
    %v408 = vpop.f32.mrb[0].mxu0
    %409 = vdwg.mxu0
    %v410 = vpack.c.bf16 %v407, %v404
    %v412 = vlaneseq
    %v413 = vshrl.u32 %v412, 7
    %v414 = vsub.s32 0, %v413
    %v415 = vrot.slane %v99, %v414
    %v433 = vunpack.c.l.b16 %v81
    %v434 = vunpack.c.l.b16 %v82
    %v435 = vunpack.c.l.b16 %v83
    %v436 = vunpack.c.l.b16 %v84
    %v437 = vunpack.c.l.b16 %v85
    %v438 = vunpack.c.l.b16 %v86
    %v439 = vunpack.c.l.b16 %v87
    %v440 = vunpack.c.l.b16 %v88
    %v441 = vunpack.c.l.b16 %v89
    %v442 = vunpack.c.l.b16 %v90
    %v443 = vunpack.c.l.b16 %v91
    %v444 = vunpack.c.l.b16 %v92
    %v445 = vunpack.c.l.b16 %v93
    %v446 = vunpack.c.l.b16 %v94
    %v447 = vunpack.c.l.b16 %v95
    %v448 = vunpack.c.l.b16 %v96
    %v449 = vpack.c.b16 %v434, %v433
    %v450 = vpack.c.b16 %v436, %v435
    %v451 = vpack.c.b16 %v438, %v437
    %v452 = vpack.c.b16 %v440, %v439
    %v453 = vpack.c.b16 %v442, %v441
    %v454 = vpack.c.b16 %v444, %v443
    %v455 = vpack.c.b16 %v446, %v445
    %v456 = vpack.c.b16 %v448, %v447
    %465 = vmatprep.subr.bf16.mxu0 0
    %466 = vmatpush1.bf16.msra.mxu0 %v449
    %467 = vmatprep.subr.bf16.mxu0 0
    %468 = vmatpush1.bf16.msra.mxu0 %v450
    %469 = vmatprep.subr.bf16.mxu0 0
    %470 = vmatpush1.bf16.msra.mxu0 %v451
    %471 = vmatprep.subr.bf16.mxu0 0
    %472 = vmatpush1.bf16.msra.mxu0 %v452
    %473 = vmatprep.subr.bf16.mxu0 0
    %474 = vmatpush1.bf16.msra.mxu0 %v453
    %475 = vmatprep.subr.bf16.mxu0 0
    %476 = vmatpush1.bf16.msra.mxu0 %v454
    %477 = vmatprep.subr.bf16.mxu0 0
    %478 = vmatpush1.bf16.msra.mxu0 %v455
    %479 = vmatprep.subr.bf16.mxu0 0
    %480 = vmatpush1.bf16.msra.mxu0 %v456
    %481 = vmatprep.subr.bf16.mxu0 0
    %482 = vmatpush1.bf16.msra.mxu0 0
    %483 = vmatprep.subr.bf16.mxu0 0
    %484 = vmatpush1.bf16.msra.mxu0 0
    %485 = vmatprep.subr.bf16.mxu0 0
    %486 = vmatpush1.bf16.msra.mxu0 0
    %487 = vmatprep.subr.bf16.mxu0 0
    %488 = vmatpush1.bf16.msra.mxu0 0
    %489 = vmatprep.subr.bf16.mxu0 0
    %490 = vmatpush1.bf16.msra.mxu0 0
    %491 = vmatprep.subr.bf16.mxu0 0
    %492 = vmatpush1.bf16.msra.mxu0 0
    %493 = vmatprep.subr.bf16.mxu0 0
    %494 = vmatpush1.bf16.msra.mxu0 0
    %495 = vmatprep.subr.bf16.mxu0 0
    %496 = vmatpush1.bf16.msra.mxu0 0
    %497 = vmatprep.mubr.bf16.mxu0 0
    %498 = vmatmul.mubr.bf16.gmra.mrb[0].mxu0 %v410
    %v499 = vpop.f32.mrb[0].mxu0
    %v500 = vadd.f32 %v415, %v499
    %v501 = vpop.f32.mrb[0].mxu0
    %v502 = vpop.f32.mrb[0].mxu0
    %v503 = vadd.f32 %v415, %v502
    %v504 = vpop.f32.mrb[0].mxu0
    %505 = vdwg.mxu0
    %506 = vst [vmem:[#allocation8] sm:$0xff] %v500
    %507 = vst [vmem:[#allocation8 + $0x8] sm:$0xff] %v503
    // Predicated region
    $region34: #{tpu_custom_call.1} parent=1 // pred_check
      _
    $region35: #{tpu_custom_call.1} parent=1 // pred_check_branch
      %509 = sbr.rel (0) target = $region37
    $region36: #{tpu_custom_call.1} parent=1 // pred_region
      %s511 = ssub.s32 256, 256
      %512 = vsyncadd [#allocation4], %s511
      %s513 = sshll.u32 [#allocation8], 4
      %s514 = int_to_ptr.vmem [resolvable:$true] %s513
      %519 = dma.vmem_to_hbm [thread:$0]  %s514, 256, %s5, [#allocation4], 128, 128, 8
    $region37: #{tpu_custom_call.1} parent=1 // pred_fallthru
      _
    // Predicated region
    $region38: #{tpu_custom_call.1} parent=1 // pred_check
      _
    $region39: #{tpu_custom_call.1} parent=1 // pred_check_branch
      %521 = sbr.rel (0) target = $region41
    $region40: #{tpu_custom_call.1} parent=1 // pred_region
      %522 = dma.done [#allocation4], 256
    $region41: #{tpu_custom_call.1} parent=1 // pred_fallthru
      _
    %523 = vsyncpa [#allocation3], 1
    %524 = vsyncpa [#allocation6], 1
    %525 = vsyncpa [#allocation4], 1

</llo_original>
